<compile_context>
chip_gen: v7x
topology: tpu7x:2x2x1
jax: 0.10.0
libtpu: 0.0.40
codegen_flags: <defaults>
</compile_context>

<pallas_src>
import functools

import jax
import jax.numpy as jnp
from jax.experimental import pallas as pl
from jax.experimental.pallas import tpu as pltpu

_LANE = 128
_SUBLANE = 8

# Cached result of the one-time pl.Buffered(1) availability probe.
_BUFFERED_OK = None


def _round_up(x, m):
    return ((x + m - 1) // m) * m


def _linear_kernel(x_ref, w_ref, b_ref, o_ref):
    # x_ref : (bn, in_dim)   features tile (VMEM)
    # w_ref : (in_dim, bo)   weight tile, already transposed to [K, N] (resident)
    # b_ref : (1, bo)        bias row (resident)
    # o_ref : (bn, bo)       output tile
    acc = jnp.dot(x_ref[...], w_ref[...], preferred_element_type=jnp.float32)
    o_ref[...] = (acc + b_ref[...].astype(jnp.float32)).astype(o_ref.dtype)


@functools.partial(
    jax.jit, static_argnames=("bn", "bo", "single_buffer_residents")
)
def _pallas_linear(x, w_t, b2, *, bn, bo, single_buffer_residents):
    n, in_dim = x.shape
    out_p = w_t.shape[1]
    grid = (pl.cdiv(n, bn), pl.cdiv(out_p, bo))

    # Single-buffer the resident (constant index_map) weight/bias blocks:
    # default double-buffering just duplicates them in VMEM for no benefit.
    resident_kwargs = {}
    if single_buffer_residents:
        resident_kwargs = dict(pipeline_mode=pl.Buffered(1))

    # Explicit scoped-VMEM budget: v5e defaults to 16 MiB, v6e to 32 MiB;
    # cap at 64 MiB so the value is also valid on v7x (64 MiB physical).
    itemsize = jnp.dtype(x.dtype).itemsize
    vmem_bytes = (
        2 * bn * in_dim * itemsize                       # input tiles (2 bufs)
        + 2 * bn * bo * itemsize                         # output tiles (2 bufs)
        + 2 * in_dim * bo * jnp.dtype(w_t.dtype).itemsize  # weight (<=2 bufs)
        + 2 * bo * jnp.dtype(b2.dtype).itemsize          # bias
    )
    vmem_limit = int(min(max(2 * vmem_bytes, 32 << 20), 64 << 20))

    return pl.pallas_call(
        _linear_kernel,
        out_shape=jax.ShapeDtypeStruct((n, out_p), x.dtype),
        grid=grid,
        in_specs=[
            pl.BlockSpec((bn, in_dim), lambda i, j: (i, 0)),   # features tile
            pl.BlockSpec((in_dim, bo), lambda i, j: (0, j),    # weight [K, N]
                         **resident_kwargs),
            pl.BlockSpec((1, bo), lambda i, j: (0, j),         # bias row
                         **resident_kwargs),
        ],
        out_specs=pl.BlockSpec((bn, bo), lambda i, j: (i, j)),
        compiler_params=pltpu.CompilerParams(
            dimension_semantics=("parallel", "parallel"),
            vmem_limit_bytes=vmem_limit,
        ),
    )(x, w_t, b2)


def linear_prep_forward(ids, features, weight, bias, layer_idx=0, *,
                        block_n=4096, block_out=512):
    """Pallas equivalent of LinearPrep.forward: features @ W^T + b.

    `ids` / `layer_idx` accepted for signature parity but unused (as in the
    PyTorch module).
    """
    del ids, layer_idx
    features = jnp.asarray(features)
    weight = jnp.asarray(weight)
    bias = jnp.asarray(bias)

    n, in_dim = features.shape
    out_dim, in_dim_w = weight.shape
    assert in_dim == in_dim_w
    assert bias.shape == (out_dim,)

    # Output-lane padding policy: only pad when out_dim > 128 and not already
    # a multiple of 128 (small pad fraction).  For small out_dim (e.g. 32) a
    # narrow store is much cheaper than 4-6x extra HBM output traffic + slice.
    if out_dim % _LANE == 0 or out_dim <= _LANE:
        out_p = out_dim
    else:
        out_p = _round_up(out_dim, _LANE)
    if out_p != out_dim:
        weight = jnp.pad(weight, ((0, out_p - out_dim), (0, 0)))
        bias = jnp.pad(bias, (0, out_p - out_dim))

    # One-time XLA transpose to MXU-native [K, N]; padded bias as a lane row.
    w_t = jnp.transpose(weight)          # (in_dim, out_p)
    b2 = bias.reshape(1, out_p)

    # ---- tile sizing ----
    bo = out_p if out_p <= block_out else block_out      # out_p tiling (future scaling)
    bn = min(block_n, n)
    if n > 1024:
        # Give v7x's two TensorCores at least two "parallel" N tiles.
        bn = min(bn, _round_up((n + 1) // 2, _SUBLANE))
    if bn < n:
        # Partial tiling requires sublane-aligned block rows.
        bn = max(_SUBLANE, (bn // _SUBLANE) * _SUBLANE)

    single_buffer = pl.cdiv(out_p, bo) == 1   # weight/bias index_map constant

    global _BUFFERED_OK
    if single_buffer and _BUFFERED_OK is None:
        # One-time probe: pl.Buffered(1) support varies across JAX versions;
        # fall back to default double-buffering (few KiB wasted) if rejected.
        try:
            out = _pallas_linear(features, w_t, b2, bn=bn, bo=bo,
                                 single_buffer_residents=True)
            _BUFFERED_OK = True
        except Exception:
            _BUFFERED_OK = False
            out = _pallas_linear(features, w_t, b2, bn=bn, bo=bo,
                                 single_buffer_residents=False)
    else:
        out = _pallas_linear(
            features, w_t, b2, bn=bn, bo=bo,
            single_buffer_residents=bool(single_buffer and _BUFFERED_OK))

    return out[:, :out_dim] if out_p != out_dim else out


if __name__ == "__main__":
    # Module config: in_dim=16, n_node=8, out_dim=32 (native LinearPrep sizes).
    in_dim, n_node, out_dim = 16, 8, 32

    key = jax.random.PRNGKey(0)
    k_w, k_b, k_x = jax.random.split(key, 3)

    # Deterministic parameter init (uniform, like PyTorch's default Linear init).
    bound = 1.0 / (in_dim ** 0.5)
    weight = jax.random.uniform(k_w, (out_dim, in_dim), jnp.float32, -bound, bound)
    bias = jax.random.uniform(k_b, (out_dim,), jnp.float32, -bound, bound)

    ids = jnp.arange(n_node, dtype=jnp.int32)              # unused by forward
    features = jax.random.normal(k_x, (n_node, in_dim), jnp.float32)

    out = linear_prep_forward(ids, features, weight, bias)
    out = jax.block_until_ready(out)
    ref = features @ weight.T + bias
    assert out.shape == (n_node, out_dim)
    assert jnp.allclose(out, ref, atol=1e-5, rtol=1e-5)

    # Secondary check: larger / ragged shapes exercise the multi-tile grid,
    # the >128 padded-output path and the two-TC split logic.
    k2 = jax.random.PRNGKey(1)
    k_w2, k_b2, k_x2 = jax.random.split(k2, 3)
    n2, in2, out2 = 1030, 16, 160
    bound2 = 1.0 / (in2 ** 0.5)
    w2 = jax.random.uniform(k_w2, (out2, in2), jnp.float32, -bound2, bound2)
    b2v = jax.random.uniform(k_b2, (out2,), jnp.float32, -bound2, bound2)
    x2 = jax.random.normal(k_x2, (n2, in2), jnp.float32)
    out_big = linear_prep_forward(jnp.arange(n2, dtype=jnp.int32), x2, w2, b2v)
    out_big = jax.block_until_ready(out_big)
    ref_big = x2 @ w2.T + b2v
    assert out_big.shape == (n2, out2)
    assert jnp.allclose(out_big, ref_big, atol=1e-4, rtol=1e-4)

    print("KERNEL_OK")
</pallas_src>

<mosaic_0001>
module attributes {stable_mosaic.version = 11 : i64} {
  func.func @_linear_kernel(%arg0: i32, %arg1: i32, %arg2: memref<8x16xf32, #tpu.memory_space<vmem>>, %arg3: memref<16x32xf32, #tpu.memory_space<vmem>>, %arg4: memref<1x32xf32, #tpu.memory_space<vmem>>, %arg5: memref<8x32xf32, #tpu.memory_space<vmem>>) attributes {dimension_semantics = [#tpu.dimension_semantics<parallel>, #tpu.dimension_semantics<parallel>], iteration_bounds = array<i64: 1, 1>, scalar_prefetch = 0 : i64, scratch_operands = 0 : i64, tpu.core_type = #tpu.core_type<tc>, window_params = [{transform_indices = @transform_0, window_bounds = array<i64: 8, 16>}, {pipeline_mode = #tpu.pipeline_mode<synchronous>, transform_indices = @transform_1, window_bounds = array<i64: 16, 32>}, {pipeline_mode = #tpu.pipeline_mode<synchronous>, transform_indices = @transform_2, window_bounds = array<i64: 1, 32>}, {transform_indices = @transform_3, window_bounds = array<i64: 8, 32>}]} {
    %c0 = arith.constant 0 : index
    %c0_0 = arith.constant 0 : index
    %0 = vector.load %arg2[%c0, %c0_0] : memref<8x16xf32, #tpu.memory_space<vmem>>, vector<8x16xf32>
    %c0_1 = arith.constant 0 : index
    %c0_2 = arith.constant 0 : index
    %1 = vector.load %arg3[%c0_1, %c0_2] : memref<16x32xf32, #tpu.memory_space<vmem>>, vector<16x32xf32>
    %cst = arith.constant dense<0.000000e+00> : vector<8x32xf32>
    %2 = tpu.matmul %0, %1, %cst {dimension_numbers = #tpu.dot_dimension_numbers<[1], [0], [0], [1], [0, 0, 1, 1], [], []>} : vector<8x16xf32>, vector<16x32xf32>, vector<8x32xf32> -> vector<8x32xf32>
    %c0_3 = arith.constant 0 : index
    %c0_4 = arith.constant 0 : index
    %3 = vector.load %arg4[%c0_3, %c0_4] : memref<1x32xf32, #tpu.memory_space<vmem>>, vector<1x32xf32>
    %4 = vector.broadcast %3 : vector<1x32xf32> to vector<8x32xf32>
    %5 = arith.addf %2, %4 : vector<8x32xf32>
    %c0_5 = arith.constant 0 : index
    %c0_6 = arith.constant 0 : index
    %6 = vector.load %arg5[%c0_5, %c0_6] : memref<8x32xf32, #tpu.memory_space<vmem>>, vector<8x32xf32>
    tpu.vector_store %arg5[%c0_5, %c0_6], %5 {strides = array<i32>} : memref<8x32xf32, #tpu.memory_space<vmem>>, vector<8x32xf32>,
    return
  }
  func.func @transform_0(%arg0: i32, %arg1: i32) -> (i32, i32) {
    %c0_i32 = arith.constant 0 : i32
    %c0_i32_0 = arith.constant 0 : i32
    return %arg0, %c0_i32 : i32, i32
  }
  func.func @transform_1(%arg0: i32, %arg1: i32) -> (i32, i32) {
    %c0_i32 = arith.constant 0 : i32
    %c0_i32_0 = arith.constant 0 : i32
    return %c0_i32, %arg1 : i32, i32
  }
  func.func @transform_2(%arg0: i32, %arg1: i32) -> (i32, i32) {
    %c0_i32 = arith.constant 0 : i32
    %c0_i32_0 = arith.constant 0 : i32
    return %c0_i32, %arg1 : i32, i32
  }
  func.func @transform_3(%arg0: i32, %arg1: i32) -> (i32, i32) {
    %c0_i32 = arith.constant 0 : i32
    return %arg0, %arg1 : i32, i32
  }
}

module attributes {stable_mosaic.version = 11 : i64} {
  func.func @_linear_kernel(%arg0: i32, %arg1: i32, %arg2: memref<8x16xf32, #tpu.memory_space<vmem>>, %arg3: memref<16x32xf32, #tpu.memory_space<vmem>>, %arg4: memref<1x32xf32, #tpu.memory_space<vmem>>, %arg5: memref<8x32xf32, #tpu.memory_space<vmem>>) attributes {dimension_semantics = [#tpu.dimension_semantics<parallel>, #tpu.dimension_semantics<parallel>], iteration_bounds = array<i64: 1, 1>, scalar_prefetch = 0 : i64, scratch_operands = 0 : i64, tpu.core_type = #tpu.core_type<tc>, window_params = [{transform_indices = @transform_0, window_bounds = array<i64: 8, 16>}, {transform_indices = @transform_1, window_bounds = array<i64: 16, 32>}, {transform_indices = @transform_2, window_bounds = array<i64: 1, 32>}, {transform_indices = @transform_3, window_bounds = array<i64: 8, 32>}]} {
    %c0 = arith.constant 0 : index
    %c0_0 = arith.constant 0 : index
    %0 = vector.load %arg2[%c0, %c0_0] : memref<8x16xf32, #tpu.memory_space<vmem>>, vector<8x16xf32>
    %c0_1 = arith.constant 0 : index
    %c0_2 = arith.constant 0 : index
    %1 = vector.load %arg3[%c0_1, %c0_2] : memref<16x32xf32, #tpu.memory_space<vmem>>, vector<16x32xf32>
    %cst = arith.constant dense<0.000000e+00> : vector<8x32xf32>
    %2 = tpu.matmul %0, %1, %cst {dimension_numbers = #tpu.dot_dimension_numbers<[1], [0], [0], [1], [0, 0, 1, 1], [], []>} : vector<8x16xf32>, vector<16x32xf32>, vector<8x32xf32> -> vector<8x32xf32>
    %c0_3 = arith.constant 0 : index
    %c0_4 = arith.constant 0 : index
    %3 = vector.load %arg4[%c0_3, %c0_4] : memref<1x32xf32, #tpu.memory_space<vmem>>, vector<1x32xf32>
    %4 = vector.broadcast %3 : vector<1x32xf32> to vector<8x32xf32>
    %5 = arith.addf %2, %4 : vector<8x32xf32>
    %c0_5 = arith.constant 0 : index
    %c0_6 = arith.constant 0 : index
    %6 = vector.load %arg5[%c0_5, %c0_6] : memref<8x32xf32, #tpu.memory_space<vmem>>, vector<8x32xf32>
    tpu.vector_store %arg5[%c0_5, %c0_6], %5 {strides = array<i32>} : memref<8x32xf32, #tpu.memory_space<vmem>>, vector<8x32xf32>,
    return
  }
  func.func @transform_0(%arg0: i32, %arg1: i32) -> (i32, i32) {
    %c0_i32 = arith.constant 0 : i32
    %c0_i32_0 = arith.constant 0 : i32
    return %arg0, %c0_i32 : i32, i32
  }
  func.func @transform_1(%arg0: i32, %arg1: i32) -> (i32, i32) {
    %c0_i32 = arith.constant 0 : i32
    %c0_i32_0 = arith.constant 0 : i32
    return %c0_i32, %arg1 : i32, i32
  }
  func.func @transform_2(%arg0: i32, %arg1: i32) -> (i32, i32) {
    %c0_i32 = arith.constant 0 : i32
    %c0_i32_0 = arith.constant 0 : i32
    return %c0_i32, %arg1 : i32, i32
  }
  func.func @transform_3(%arg0: i32, %arg1: i32) -> (i32, i32) {
    %c0_i32 = arith.constant 0 : i32
    return %arg0, %arg1 : i32, i32
  }
}

</mosaic_0001>

<llo_original>
// kernel: _pallas_linear.1
$region0: #{_pallas_linear.1}
  #allocation0 [shape = 'u32[]', space=smem, size = 0x4, offset = 0x4, fixed_abs, tag = 'smem constant byte address 0x4 - core index']
  #allocation1 [shape = 'u32[144,128]{1,0:T(1,128)}', space=vmem, size = 0x12000, scoped, tag = 'internal scratch']
  %s0 = inlined_call_operand.hbm [shape: f32[8,16], index: 0, kind: input, shape index: {}]
  %s1 = inlined_call_operand.hbm [shape: f32[16,32], index: 1, kind: input, shape index: {}]
  %s2 = inlined_call_operand.vmem [shape: f32[1,32], index: 2, kind: input, shape index: {}]
  %s3 = inlined_call_operand.hbm [shape: f32[8,32], index: 3, kind: output, shape index: {}]
  %s4 = sld [smem:[#allocation0]]
  $region30: #{_pallas_linear.1} parent=0
    _
  %s6 = ssub.s32 1, %s4
  %s7 = scalar_select 0, %s6, %s4
  $region1: #{_pallas_linear.1} parent=0
    #allocation2 [shape = 'u8[4096]{0}', space=vmem, size = 0x1000, scoped, tag = 'input window, operand 0, single buffered']
    #allocation3 [shape = 's32[1]{0}', space=sflag, size = 0x4, scoped, tag = 'scoped memory for _pallas_linear.1']
    #allocation4 [shape = 's32[1]{0}', space=sflag, size = 0x4, scoped, tag = 'scoped memory for _pallas_linear.1']
    #allocation5 [shape = 'u8[8192]{0}', space=vmem, size = 0x2000, scoped, tag = 'input window, operand 1, single buffered']
    #allocation6 [shape = 's32[1]{0}', space=sflag, size = 0x4, scoped, tag = 'scoped memory for _pallas_linear.1']
    #allocation7 [shape = 'u8[4096]{0}', space=vmem, size = 0x1000, scoped, tag = 'output window, operand 0, single buffered']
    %8 = vsyncpa [#allocation3], 0
    %9 = vsyncpa [#allocation6], 0
    %10 = vsyncpa [#allocation4], 0
    // Predicated region
    $region2: #{_pallas_linear.1} parent=1 // pred_check
      _
    $region3: #{_pallas_linear.1} parent=1 // pred_check_branch
      %12 = sbr.rel (0) target = $region5
    $region4: #{_pallas_linear.1} parent=1 // pred_region
      %s14 = ssub.s32 128, 128
      %15 = vsyncadd [#allocation3], %s14
      %s17 = sshll.u32 [#allocation2], 4
      %s18 = int_to_ptr.vmem [resolvable:$true] %s17
      %20 = dma.hbm_to_vmem [thread:$0]  %s0, 128, %s18, [#allocation3]
    $region5: #{_pallas_linear.1} parent=1 // pred_fallthru
      _
    // Predicated region
    $region6: #{_pallas_linear.1} parent=1 // pred_check
      _
    $region7: #{_pallas_linear.1} parent=1 // pred_check_branch
      %22 = sbr.rel (0) target = $region9
    $region8: #{_pallas_linear.1} parent=1 // pred_region
      %s24 = ssub.s32 256, 256
      %25 = vsyncadd [#allocation6], %s24
      %s26 = sshll.u32 [#allocation5], 4
      %s27 = int_to_ptr.vmem [resolvable:$true] %s26
      %32 = dma.hbm_to_vmem [thread:$0]  %s1, 256, %s27, [#allocation6], 128, 128, 8
    $region9: #{_pallas_linear.1} parent=1 // pred_fallthru
      _
    // Predicated region
    $region10: #{_pallas_linear.1} parent=1 // pred_check
      _
    $region11: #{_pallas_linear.1} parent=1 // pred_check_branch
      %34 = sbr.rel (0) target = $region13
    $region12: #{_pallas_linear.1} parent=1 // pred_region
      _
    $region13: #{_pallas_linear.1} parent=1 // pred_fallthru
      _
    // Predicated region
    $region14: #{_pallas_linear.1} parent=1 // pred_check
      _
    $region15: #{_pallas_linear.1} parent=1 // pred_check_branch
      %36 = sbr.rel (0) target = $region17
    $region16: #{_pallas_linear.1} parent=1 // pred_region
      %37 = dma.done [#allocation3], 128
    $region17: #{_pallas_linear.1} parent=1 // pred_fallthru
      _
    // Predicated region
    $region18: #{_pallas_linear.1} parent=1 // pred_check
      _
    $region19: #{_pallas_linear.1} parent=1 // pred_check_branch
      %39 = sbr.rel (0) target = $region21
    $region20: #{_pallas_linear.1} parent=1 // pred_region
      %40 = dma.done [#allocation6], 256
    $region21: #{_pallas_linear.1} parent=1 // pred_fallthru
      _
    %v41 = vld [vmem:[#allocation2] sm:$0xff]
    %v42 = vld [vmem:[#allocation5] sm:$0xff]
    %v43 = vld [vmem:[#allocation5 + $0x8] sm:$0xff]
    %v44 = vld [vmem:[%s2] sm:$0x1]
    %v46 = vlaneseq
    %v47 = vshrl.u32 %v46, 7
    %v48 = vsub.s32 0, %v47
    %v49 = vrot.slane %v44, %v48
    %vm51 = vcmask 130048
    %v53 = vsel %vm51, %v41, 0
    %55 = vmatprep.subr.mxu0 0.0
    %56 = vmatpush1.msra.mxu0 %v42
    %57 = vmatprep.subr.mxu0 0.0
    %58 = vmatpush1.msra.mxu0 %v43
    %59 = vmatprep.subr.mxu0 0.0
    %60 = vmatpush1.msra.mxu0 0.0
    %61 = vmatprep.subr.mxu0 0.0
    %62 = vmatpush1.msra.mxu0 0.0
    %63 = vmatprep.subr.mxu0 0.0
    %64 = vmatpush1.msra.mxu0 0.0
    %65 = vmatprep.subr.mxu0 0.0
    %66 = vmatpush1.msra.mxu0 0.0
    %67 = vmatprep.subr.mxu0 0.0
    %68 = vmatpush1.msra.mxu0 0.0
    %69 = vmatprep.subr.mxu0 0.0
    %70 = vmatpush1.msra.mxu0 0.0
    %71 = vmatprep.subr.mxu0 0.0
    %72 = vmatpush1.msra.mxu0 0.0
    %73 = vmatprep.subr.mxu0 0.0
    %74 = vmatpush1.msra.mxu0 0.0
    %75 = vmatprep.subr.mxu0 0.0
    %76 = vmatpush1.msra.mxu0 0.0
    %77 = vmatprep.subr.mxu0 0.0
    %78 = vmatpush1.msra.mxu0 0.0
    %79 = vmatprep.subr.mxu0 0.0
    %80 = vmatpush1.msra.mxu0 0.0
    %81 = vmatprep.subr.mxu0 0.0
    %82 = vmatpush1.msra.mxu0 0.0
    %83 = vmatprep.subr.mxu0 0.0
    %84 = vmatpush1.msra.mxu0 0.0
    %85 = vmatprep.subr.mxu0 0.0
    %86 = vmatpush1.msra.mxu0 0.0
    %87 = vmatprep.subr.mxu0 0.0
    %88 = vmatpush1.msra.mxu0 0.0
    %89 = vmatprep.subr.mxu0 0.0
    %90 = vmatpush1.msra.mxu0 0.0
    %91 = vmatprep.subr.mxu0 0.0
    %92 = vmatpush1.msra.mxu0 0.0
    %93 = vmatprep.subr.mxu0 0.0
    %94 = vmatpush1.msra.mxu0 0.0
    %95 = vmatprep.subr.mxu0 0.0
    %96 = vmatpush1.msra.mxu0 0.0
    %97 = vmatprep.subr.mxu0 0.0
    %98 = vmatpush1.msra.mxu0 0.0
    %99 = vmatprep.subr.mxu0 0.0
    %100 = vmatpush1.msra.mxu0 0.0
    %101 = vmatprep.subr.mxu0 0.0
    %102 = vmatpush1.msra.mxu0 0.0
    %103 = vmatprep.subr.mxu0 0.0
    %104 = vmatpush1.msra.mxu0 0.0
    %105 = vmatprep.subr.mxu0 0.0
    %106 = vmatpush1.msra.mxu0 0.0
    %107 = vmatprep.subr.mxu0 0.0
    %108 = vmatpush1.msra.mxu0 0.0
    %109 = vmatprep.subr.mxu0 0.0
    %110 = vmatpush1.msra.mxu0 0.0
    %111 = vmatprep.subr.mxu0 0.0
    %112 = vmatpush1.msra.mxu0 0.0
    %113 = vmatprep.subr.mxu0 0.0
    %114 = vmatpush1.msra.mxu0 0.0
    %115 = vmatprep.subr.mxu0 0.0
    %116 = vmatpush1.msra.mxu0 0.0
    %117 = vmatprep.subr.mxu0 0.0
    %118 = vmatpush1.msra.mxu0 0.0
    %119 = vmatprep.mubr.f32.mxu0 0.0
    %120 = vmatmul.mubr.f32.gmra.mrb[0].mxu0 %v53
    %v121 = vpop.f32.mrb[0].mxu0
    %v122 = vadd.f32 %v49, %v121
    %v123 = vpop.f32.mrb[0].mxu0
    %124 = vdwg.mxu0
    %vm125 = vcmask 261120
    %126 = vst.msk [vmem:[#allocation7] sm:$0xff] %vm125, %v122
    // Predicated region
    $region22: #{_pallas_linear.1} parent=1 // pred_check
      _
    $region23: #{_pallas_linear.1} parent=1 // pred_check_branch
      %128 = sbr.rel (0) target = $region25
    $region24: #{_pallas_linear.1} parent=1 // pred_region
      %s130 = ssub.s32 128, 128
      %131 = vsyncadd [#allocation4], %s130
      %s133 = sshll.u32 [#allocation7], 4
      %s134 = int_to_ptr.vmem [resolvable:$true] %s133
      %136 = dma.vmem_to_hbm [thread:$0]  %s134, 128, %s3, [#allocation4]
    $region25: #{_pallas_linear.1} parent=1 // pred_fallthru
      _
    // Predicated region
    $region26: #{_pallas_linear.1} parent=1 // pred_check
      _
    $region27: #{_pallas_linear.1} parent=1 // pred_check_branch
      %138 = sbr.rel (0) target = $region29
    $region28: #{_pallas_linear.1} parent=1 // pred_region
      %139 = dma.done [#allocation4], 128
    $region29: #{_pallas_linear.1} parent=1 // pred_fallthru
      _
    %140 = vsyncpa [#allocation3], 1
    %141 = vsyncpa [#allocation6], 1
    %142 = vsyncpa [#allocation4], 1

// kernel: _pallas_linear.1
$region0: #{_pallas_linear.1}
  #allocation0 [shape = 'u32[]', space=smem, size = 0x4, offset = 0x4, fixed_abs, tag = 'smem constant byte address 0x4 - core index']
  #allocation1 [shape = 'u32[144,128]{1,0:T(1,128)}', space=vmem, size = 0x12000, scoped, tag = 'internal scratch']
  %s0 = inlined_call_operand.hbm [shape: f32[8,16], index: 0, kind: input, shape index: {}]
  %s1 = inlined_call_operand.hbm [shape: f32[16,32], index: 1, kind: input, shape index: {}]
  %s2 = inlined_call_operand.vmem [shape: f32[1,32], index: 2, kind: input, shape index: {}]
  %s3 = inlined_call_operand.hbm [shape: f32[8,32], index: 3, kind: output, shape index: {}]
  %s4 = sld [smem:[#allocation0]]
  $region30: #{_pallas_linear.1} parent=0
    _
  %s6 = ssub.s32 1, %s4
  %s7 = scalar_select 0, %s6, %s4
  $region1: #{_pallas_linear.1} parent=0
    #allocation2 [shape = 'u8[4096]{0}', space=vmem, size = 0x1000, scoped, tag = 'input window, operand 0, single buffered']
    #allocation3 [shape = 's32[1]{0}', space=sflag, size = 0x4, scoped, tag = 'scoped memory for _pallas_linear.1']
    #allocation4 [shape = 's32[1]{0}', space=sflag, size = 0x4, scoped, tag = 'scoped memory for _pallas_linear.1']
    #allocation5 [shape = 'u8[8192]{0}', space=vmem, size = 0x2000, scoped, tag = 'input window, operand 1, single buffered']
    #allocation6 [shape = 's32[1]{0}', space=sflag, size = 0x4, scoped, tag = 'scoped memory for _pallas_linear.1']
    #allocation7 [shape = 'u8[4096]{0}', space=vmem, size = 0x1000, scoped, tag = 'output window, operand 0, single buffered']
    %8 = vsyncpa [#allocation3], 0
    %9 = vsyncpa [#allocation6], 0
    %10 = vsyncpa [#allocation4], 0
    // Predicated region
    $region2: #{_pallas_linear.1} parent=1 // pred_check
      _
    $region3: #{_pallas_linear.1} parent=1 // pred_check_branch
      %12 = sbr.rel (0) target = $region5
    $region4: #{_pallas_linear.1} parent=1 // pred_region
      %s14 = ssub.s32 128, 128
      %15 = vsyncadd [#allocation3], %s14
      %s17 = sshll.u32 [#allocation2], 4
      %s18 = int_to_ptr.vmem [resolvable:$true] %s17
      %20 = dma.hbm_to_vmem [thread:$0]  %s0, 128, %s18, [#allocation3]
    $region5: #{_pallas_linear.1} parent=1 // pred_fallthru
      _
    // Predicated region
    $region6: #{_pallas_linear.1} parent=1 // pred_check
      _
    $region7: #{_pallas_linear.1} parent=1 // pred_check_branch
      %22 = sbr.rel (0) target = $region9
    $region8: #{_pallas_linear.1} parent=1 // pred_region
      %s24 = ssub.s32 256, 256
      %25 = vsyncadd [#allocation6], %s24
      %s26 = sshll.u32 [#allocation5], 4
      %s27 = int_to_ptr.vmem [resolvable:$true] %s26
      %32 = dma.hbm_to_vmem [thread:$0]  %s1, 256, %s27, [#allocation6], 128, 128, 8
    $region9: #{_pallas_linear.1} parent=1 // pred_fallthru
      _
    // Predicated region
    $region10: #{_pallas_linear.1} parent=1 // pred_check
      _
    $region11: #{_pallas_linear.1} parent=1 // pred_check_branch
      %34 = sbr.rel (0) target = $region13
    $region12: #{_pallas_linear.1} parent=1 // pred_region
      _
    $region13: #{_pallas_linear.1} parent=1 // pred_fallthru
      _
    // Predicated region
    $region14: #{_pallas_linear.1} parent=1 // pred_check
      _
    $region15: #{_pallas_linear.1} parent=1 // pred_check_branch
      %36 = sbr.rel (0) target = $region17
    $region16: #{_pallas_linear.1} parent=1 // pred_region
      %37 = dma.done [#allocation3], 128
    $region17: #{_pallas_linear.1} parent=1 // pred_fallthru
      _
    // Predicated region
    $region18: #{_pallas_linear.1} parent=1 // pred_check
      _
    $region19: #{_pallas_linear.1} parent=1 // pred_check_branch
      %39 = sbr.rel (0) target = $region21
    $region20: #{_pallas_linear.1} parent=1 // pred_region
      %40 = dma.done [#allocation6], 256
    $region21: #{_pallas_linear.1} parent=1 // pred_fallthru
      _
    %v41 = vld [vmem:[#allocation2] sm:$0xff]
    %v42 = vld [vmem:[#allocation5] sm:$0xff]
    %v43 = vld [vmem:[#allocation5 + $0x8] sm:$0xff]
    %v44 = vld [vmem:[%s2] sm:$0x1]
    %v46 = vlaneseq
    %v47 = vshrl.u32 %v46, 7
    %v48 = vsub.s32 0, %v47
    %v49 = vrot.slane %v44, %v48
    %vm51 = vcmask 130048
    %v53 = vsel %vm51, %v41, 0
    %55 = vmatprep.subr.mxu0 0.0
    %56 = vmatpush1.msra.mxu0 %v42
    %57 = vmatprep.subr.mxu0 0.0
    %58 = vmatpush1.msra.mxu0 %v43
    %59 = vmatprep.subr.mxu0 0.0
    %60 = vmatpush1.msra.mxu0 0.0
    %61 = vmatprep.subr.mxu0 0.0
    %62 = vmatpush1.msra.mxu0 0.0
    %63 = vmatprep.subr.mxu0 0.0
    %64 = vmatpush1.msra.mxu0 0.0
    %65 = vmatprep.subr.mxu0 0.0
    %66 = vmatpush1.msra.mxu0 0.0
    %67 = vmatprep.subr.mxu0 0.0
    %68 = vmatpush1.msra.mxu0 0.0
    %69 = vmatprep.subr.mxu0 0.0
    %70 = vmatpush1.msra.mxu0 0.0
    %71 = vmatprep.subr.mxu0 0.0
    %72 = vmatpush1.msra.mxu0 0.0
    %73 = vmatprep.subr.mxu0 0.0
    %74 = vmatpush1.msra.mxu0 0.0
    %75 = vmatprep.subr.mxu0 0.0
    %76 = vmatpush1.msra.mxu0 0.0
    %77 = vmatprep.subr.mxu0 0.0
    %78 = vmatpush1.msra.mxu0 0.0
    %79 = vmatprep.subr.mxu0 0.0
    %80 = vmatpush1.msra.mxu0 0.0
    %81 = vmatprep.subr.mxu0 0.0
    %82 = vmatpush1.msra.mxu0 0.0
    %83 = vmatprep.subr.mxu0 0.0
    %84 = vmatpush1.msra.mxu0 0.0
    %85 = vmatprep.subr.mxu0 0.0
    %86 = vmatpush1.msra.mxu0 0.0
    %87 = vmatprep.subr.mxu0 0.0
    %88 = vmatpush1.msra.mxu0 0.0
    %89 = vmatprep.subr.mxu0 0.0
    %90 = vmatpush1.msra.mxu0 0.0
    %91 = vmatprep.subr.mxu0 0.0
    %92 = vmatpush1.msra.mxu0 0.0
    %93 = vmatprep.subr.mxu0 0.0
    %94 = vmatpush1.msra.mxu0 0.0
    %95 = vmatprep.subr.mxu0 0.0
    %96 = vmatpush1.msra.mxu0 0.0
    %97 = vmatprep.subr.mxu0 0.0
    %98 = vmatpush1.msra.mxu0 0.0
    %99 = vmatprep.subr.mxu0 0.0
    %100 = vmatpush1.msra.mxu0 0.0
    %101 = vmatprep.subr.mxu0 0.0
    %102 = vmatpush1.msra.mxu0 0.0
    %103 = vmatprep.subr.mxu0 0.0
    %104 = vmatpush1.msra.mxu0 0.0
    %105 = vmatprep.subr.mxu0 0.0
    %106 = vmatpush1.msra.mxu0 0.0
    %107 = vmatprep.subr.mxu0 0.0
    %108 = vmatpush1.msra.mxu0 0.0
    %109 = vmatprep.subr.mxu0 0.0
    %110 = vmatpush1.msra.mxu0 0.0
    %111 = vmatprep.subr.mxu0 0.0
    %112 = vmatpush1.msra.mxu0 0.0
    %113 = vmatprep.subr.mxu0 0.0
    %114 = vmatpush1.msra.mxu0 0.0
    %115 = vmatprep.subr.mxu0 0.0
    %116 = vmatpush1.msra.mxu0 0.0
    %117 = vmatprep.subr.mxu0 0.0
    %118 = vmatpush1.msra.mxu0 0.0
    %119 = vmatprep.mubr.f32.mxu0 0.0
    %120 = vmatmul.mubr.f32.gmra.mrb[0].mxu0 %v53
    %v121 = vpop.f32.mrb[0].mxu0
    %v122 = vadd.f32 %v49, %v121
    %v123 = vpop.f32.mrb[0].mxu0
    %124 = vdwg.mxu0
    %vm125 = vcmask 261120
    %126 = vst.msk [vmem:[#allocation7] sm:$0xff] %vm125, %v122
    // Predicated region
    $region22: #{_pallas_linear.1} parent=1 // pred_check
      _
    $region23: #{_pallas_linear.1} parent=1 // pred_check_branch
      %128 = sbr.rel (0) target = $region25
    $region24: #{_pallas_linear.1} parent=1 // pred_region
      %s130 = ssub.s32 128, 128
      %131 = vsyncadd [#allocation4], %s130
      %s133 = sshll.u32 [#allocation7], 4
      %s134 = int_to_ptr.vmem [resolvable:$true] %s133
      %136 = dma.vmem_to_hbm [thread:$0]  %s134, 128, %s3, [#allocation4]
    $region25: #{_pallas_linear.1} parent=1 // pred_fallthru
      _
    // Predicated region
    $region26: #{_pallas_linear.1} parent=1 // pred_check
      _
    $region27: #{_pallas_linear.1} parent=1 // pred_check_branch
      %138 = sbr.rel (0) target = $region29
    $region28: #{_pallas_linear.1} parent=1 // pred_region
      %139 = dma.done [#allocation4], 128
    $region29: #{_pallas_linear.1} parent=1 // pred_fallthru
      _
    %140 = vsyncpa [#allocation3], 1
    %141 = vsyncpa [#allocation6], 1
    %142 = vsyncpa [#allocation4], 1

</llo_original>
